<compile_context>
chip_gen: v6e
topology: v6e:2x2x1
jax: 0.10.0
libtpu: 0.0.40
codegen_flags: <defaults>
</compile_context>

<pallas_src>
import functools

import jax
import jax.numpy as jnp
from jax import lax
from jax.experimental import pallas as pl
from jax.experimental.pallas import tpu as pltpu

_LANE = 128
_SUB = 8
_CHUNK_ROWS = 1024                     # inner-loop chunk: (1024,128) f32 = 512 KiB
_TARGET_STEP_BYTES = 8 * 1024 * 1024   # combined input bytes DMA'd per grid step
_VMEM_LIMIT_BYTES = 32 * 1024 * 1024   # 2 inputs x 2 pipeline bufs x 4 MiB = 16 MiB
                                       # (+ small temps); v5e scoped default is 16 MiB


def _num_tensorcores() -> int:
    """2 on v7x-class chips (two TensorCores), 1 on v5e/v6e."""
    try:
        kind = jax.devices()[0].device_kind.lower()
    except Exception:
        return 1
    return 2 if "7" in kind else 1


def _make_sqdiff_kernel(tile_rows: int, chunk_rows: int, tiles_per_split: int,
                        total_tiles: int, rows: int, need_mask: bool):
    """Per-grid-step: accumulate sum((q-x)^2) into an (8,128) VMEM accumulator."""
    n_chunks = tile_rows // chunk_rows
    n_sub = chunk_rows // _SUB

    def kernel(x_ref, q_ref, out_ref, acc_ref):
        c = pl.program_id(0)   # split index ("parallel", v7x megacore)
        i = pl.program_id(1)   # tile index within split ("arbitrary")

        @pl.when(i == 0)
        def _():
            acc_ref[...] = jnp.zeros_like(acc_ref)

        def chunk_sq(k):
            r0 = pl.multiple_of(k * chunk_rows, _SUB)
            xs = x_ref[pl.ds(r0, chunk_rows), :].astype(jnp.float32)
            qs = q_ref[pl.ds(r0, chunk_rows), :].astype(jnp.float32)
            d = qs - xs
            return d * d

        def accum_unmasked(k, carry):
            sq = chunk_sq(k)
            acc_ref[...] += jnp.sum(sq.reshape(n_sub, _SUB, _LANE), axis=0)
            return carry

        if need_mask:
            t = c * tiles_per_split + i
            row0 = t * tile_rows

            def accum_masked(k, carry):
                sq = chunk_sq(k)
                # Out-of-range rows of an edge block (and padded split slots)
                # contain undefined data: discard via select, never multiply.
                ridx = row0 + k * chunk_rows + lax.broadcasted_iota(
                    jnp.int32, (chunk_rows, _LANE), 0)
                sq = jnp.where(ridx < rows, sq, 0.0)
                acc_ref[...] += jnp.sum(sq.reshape(n_sub, _SUB, _LANE), axis=0)
                return carry

            @pl.when(t < total_tiles - 1)          # interior tiles: mask-free
            def _():
                lax.fori_loop(0, n_chunks, accum_unmasked, 0)

            @pl.when(t >= total_tiles - 1)         # tail tile / padded slot
            def _():
                lax.fori_loop(0, n_chunks, accum_masked, 0)
        else:
            lax.fori_loop(0, n_chunks, accum_unmasked, 0)

        @pl.when(i == tiles_per_split - 1)
        def _():
            out_ref[...] = acc_ref[...].reshape(1, _SUB, _LANE)

    return kernel


def _sum_squared_diff_bulk(x2: jax.Array, q2: jax.Array) -> jax.Array:
    """Pallas reduction of sum((q2-x2)^2) over a (rows, 128) slab; rows >= 8."""
    rows = x2.shape[0]
    itemsizes = jnp.dtype(x2.dtype).itemsize + jnp.dtype(q2.dtype).itemsize

    if rows >= _CHUNK_ROWS:
        target_rows = max(
            _CHUNK_ROWS,
            (_TARGET_STEP_BYTES // (_LANE * itemsizes)) // _CHUNK_ROWS * _CHUNK_ROWS)
        tile_rows = min(target_rows, (rows // _CHUNK_ROWS) * _CHUNK_ROWS)
    else:
        tile_rows = (rows // _SUB) * _SUB          # rows in [8, 1024)
    chunk_rows = min(_CHUNK_ROWS, tile_rows)

    total_tiles = pl.cdiv(rows, tile_rows)
    num_splits = _num_tensorcores()
    if total_tiles < num_splits:
        num_splits = 1
    tiles_per_split = pl.cdiv(total_tiles, num_splits)
    padded = num_splits * tiles_per_split != total_tiles
    need_mask = (rows % tile_rows != 0) or padded

    if padded:
        # Clamp padded tile slots to a valid block; their rows are masked off.
        def in_map(c, i):
            return (jnp.minimum(c * tiles_per_split + i, total_tiles - 1), 0)
    else:
        def in_map(c, i):
            return (c * tiles_per_split + i, 0)

    kernel = _make_sqdiff_kernel(tile_rows, chunk_rows, tiles_per_split,
                                 total_tiles, rows, need_mask)

    partials = pl.pallas_call(
        kernel,
        out_shape=jax.ShapeDtypeStruct((num_splits, _SUB, _LANE), jnp.float32),
        grid_spec=pltpu.PrefetchScalarGridSpec(
            num_scalar_prefetch=0,
            grid=(num_splits, tiles_per_split),
            in_specs=[
                pl.BlockSpec((tile_rows, _LANE), in_map),
                pl.BlockSpec((tile_rows, _LANE), in_map),
            ],
            out_specs=pl.BlockSpec((1, _SUB, _LANE), lambda c, i: (c, 0, 0)),
            scratch_shapes=[pltpu.VMEM((_SUB, _LANE), jnp.float32)],
        ),
        compiler_params=pltpu.CompilerParams(
            dimension_semantics=("parallel", "arbitrary"),
            vmem_limit_bytes=_VMEM_LIMIT_BYTES,
        ),
    )(x2, q2)
    # Final 8x128 -> scalar reduce (tiny) outside the kernel.
    return jnp.sum(partials)


def _sum_squared_diff(x: jax.Array, q: jax.Array) -> jax.Array:
    """sum((q - x)^2) over all elements (f32 accumulation)."""
    assert x.shape == q.shape, "input/quantized shapes must match"
    n = x.size
    xf = x.reshape(-1)
    qf = q.reshape(-1)

    rows = n // _LANE
    ssd = jnp.float32(0.0)

    if rows >= _SUB:                       # at least one (8,128) block -> kernel
        bulk = rows * _LANE
        if bulk == n:
            x2 = xf.reshape(rows, _LANE)   # pure reshape, no HBM copy
            q2 = qf.reshape(rows, _LANE)
        else:
            # TODO(synk): for n % 128 != 0 this prefix slice may materialize a
            # copy before the kernel; truly ragged element counts are rare.
            x2 = xf[:bulk].reshape(rows, _LANE)
            q2 = qf[:bulk].reshape(rows, _LANE)
        ssd = ssd + _sum_squared_diff_bulk(x2, q2)
    else:
        bulk = 0

    if bulk < n:
        # <128-element ragged tail (or tiny inputs): plain XLA.
        xt = xf[bulk:].astype(jnp.float32)
        qt = qf[bulk:].astype(jnp.float32)
        ssd = ssd + jnp.sum((qt - xt) ** 2)

    return ssd


@functools.partial(jax.jit, static_argnames=("commitment_term",))
def quantization_loss(input_vectors: jax.Array,
                      quantized_vectors: jax.Array,
                      commitment_term: float) -> jax.Array:
    """Forward pass of QuantizationLoss."""
    n = input_vectors.size
    ssd = _sum_squared_diff(input_vectors, quantized_vectors)
    mse = ssd / jnp.float32(n)
    encoding_latent_loss = mse     # MSE(q.detach(), x)  -- same value in fwd
    quantized_latent_loss = mse    # MSE(q, x.detach())  -- same value in fwd
    return quantized_latent_loss + jnp.float32(commitment_term) * encoding_latent_loss


if __name__ == "__main__":
    commitment_term = 0.25
    key = jax.random.PRNGKey(0)

    def ref_loss(xa, qa, ct):
        m = jnp.mean((qa.astype(jnp.float32) - xa.astype(jnp.float32)) ** 2)
        return m + ct * m

    # Primary small example (NCHW): batch=2, channels=4, spatial=16x16.
    k1, k2 = jax.random.split(key)
    x = jax.random.normal(k1, (2, 4, 16, 16), dtype=jnp.float32)
    q = jax.random.normal(k2, (2, 4, 16, 16), dtype=jnp.float32)
    loss = jax.block_until_ready(quantization_loss(x, q, commitment_term))
    assert jnp.allclose(loss, ref_loss(x, q, commitment_term),
                        rtol=1e-4, atol=1e-6), loss

    # Additional correctness checks covering the kernel's code paths:
    #   (8,16,64,64)   -> single tile, 4 inner chunks
    #   (32,16,64,64)  -> two full 8192-row tiles, accumulation across steps
    #   (3,4,128,256)  -> tile_rows below target, 3 inner chunks
    #   (4,3,333,128)  -> partial tail tile -> in-kernel masked epilogue
    #   (3,5,7,11)     -> rows%8 != 0 edge block + <128-element plain-JAX tail
    #   (2,3,5,7)      -> tiny input, pure plain-JAX path
    #   (2,8,64,64) bf16 -> bf16 inputs, in-kernel f32 upcast
    checks = [
        ((8, 16, 64, 64), jnp.float32),
        ((32, 16, 64, 64), jnp.float32),
        ((3, 4, 128, 256), jnp.float32),
        ((4, 3, 333, 128), jnp.float32),
        ((3, 5, 7, 11), jnp.float32),
        ((2, 3, 5, 7), jnp.float32),
        ((2, 8, 64, 64), jnp.bfloat16),
    ]
    for shape, dt in checks:
        k1, k2, key = jax.random.split(key, 3)
        xs = jax.random.normal(k1, shape, dtype=dt)
        qs = jax.random.normal(k2, shape, dtype=dt)
        got = jax.block_until_ready(quantization_loss(xs, qs, commitment_term))
        want = ref_loss(xs, qs, commitment_term)
        assert jnp.allclose(got, want, rtol=1e-3, atol=1e-5), (shape, got, want)

    print("KERNEL_OK")
</pallas_src>

<mosaic_0001>
module attributes {stable_mosaic.version = 11 : i64} {
  func.func @kernel(%arg0: i32, %arg1: i32, %arg2: memref<16x128xf32, #tpu.memory_space<vmem>>, %arg3: memref<16x128xf32, #tpu.memory_space<vmem>>, %arg4: memref<1x8x128xf32, #tpu.memory_space<vmem>>, %arg5: memref<8x128xf32, #tpu.memory_space<vmem>>) attributes {dimension_semantics = [#tpu.dimension_semantics<parallel>, #tpu.dimension_semantics<arbitrary>], iteration_bounds = array<i64: 1, 1>, scalar_prefetch = 0 : i64, scratch_operands = 1 : i64, tpu.core_type = #tpu.core_type<tc>, window_params = [{transform_indices = @transform_0, window_bounds = array<i64: 16, 128>}, {transform_indices = @transform_1, window_bounds = array<i64: 16, 128>}, {transform_indices = @transform_2, window_bounds = array<i64: 1, 8, 128>}]} {
    %c0_i32 = arith.constant 0 : i32
    %0 = arith.cmpi eq, %arg1, %c0_i32 : i32
    %1 = arith.extui %0 : i1 to i32
    %c0_i32_0 = arith.constant 0 : i32
    %2 = arith.cmpi ne, %1, %c0_i32_0 : i32
    scf.if %2 {
      %cst_9 = arith.constant 0.000000e+00 : f32
      %19 = vector.broadcast %cst_9 : f32 to vector<8x128xf32>
      %c0_10 = arith.constant 0 : index
      %c0_11 = arith.constant 0 : index
      %20 = vector.load %arg5[%c0_10, %c0_11] : memref<8x128xf32, #tpu.memory_space<vmem>>, vector<8x128xf32>
      tpu.vector_store %arg5[%c0_10, %c0_11], %19 {strides = array<i32>} : memref<8x128xf32, #tpu.memory_space<vmem>>, vector<8x128xf32>,
    } else {
    }
    %c0_i32_1 = arith.constant 0 : i32
    %c16_i32 = arith.constant 16 : i32
    %3 = arith.muli %c0_i32_1, %c16_i32 : i32
    %4 = tpu.assume_multiple %3, 8 : i32
    %5 = arith.index_cast %4 : i32 to index
    %c0 = arith.constant 0 : index
    %6 = vector.load %arg2[%5, %c0] : memref<16x128xf32, #tpu.memory_space<vmem>>, vector<16x128xf32>
    %7 = arith.index_cast %4 : i32 to index
    %c0_2 = arith.constant 0 : index
    %8 = vector.load %arg3[%7, %c0_2] : memref<16x128xf32, #tpu.memory_space<vmem>>, vector<16x128xf32>
    %9 = arith.subf %8, %6 : vector<16x128xf32>
    %10 = arith.mulf %9, %9 : vector<16x128xf32>
    %c0_3 = arith.constant 0 : index
    %c0_4 = arith.constant 0 : index
    %11 = vector.load %arg5[%c0_3, %c0_4] : memref<8x128xf32, #tpu.memory_space<vmem>>, vector<8x128xf32>
    %12 = vector.shape_cast %10 : vector<16x128xf32> to vector<2x8x128xf32>
    %cst = arith.constant dense<0.000000e+00> : vector<8x128xf32>
    %13 = vector.multi_reduction <add>, %12, %cst [0] : vector<2x8x128xf32> to vector<8x128xf32>
    %14 = arith.addf %11, %13 : vector<8x128xf32>
    %c0_5 = arith.constant 0 : index
    %c0_6 = arith.constant 0 : index
    %15 = vector.load %arg5[%c0_5, %c0_6] : memref<8x128xf32, #tpu.memory_space<vmem>>, vector<8x128xf32>
    tpu.vector_store %arg5[%c0_5, %c0_6], %14 {strides = array<i32>} : memref<8x128xf32, #tpu.memory_space<vmem>>, vector<8x128xf32>,
    %c1_i32 = arith.constant 1 : i32
    %c0_i32_7 = arith.constant 0 : i32
    %16 = arith.cmpi eq, %arg1, %c0_i32_7 : i32
    %17 = arith.extui %16 : i1 to i32
    %c0_i32_8 = arith.constant 0 : i32
    %18 = arith.cmpi ne, %17, %c0_i32_8 : i32
    scf.if %18 {
      %c0_9 = arith.constant 0 : index
      %c0_10 = arith.constant 0 : index
      %19 = vector.load %arg5[%c0_9, %c0_10] : memref<8x128xf32, #tpu.memory_space<vmem>>, vector<8x128xf32>
      %20 = vector.shape_cast %19 : vector<8x128xf32> to vector<1x8x128xf32>
      %c0_11 = arith.constant 0 : index
      %c0_12 = arith.constant 0 : index
      %c0_13 = arith.constant 0 : index
      %21 = vector.load %arg4[%c0_11, %c0_12, %c0_13] : memref<1x8x128xf32, #tpu.memory_space<vmem>>, vector<1x8x128xf32>
      tpu.vector_store %arg4[%c0_11, %c0_12, %c0_13], %20 {strides = array<i32>} : memref<1x8x128xf32, #tpu.memory_space<vmem>>, vector<1x8x128xf32>,
    } else {
    }
    return
  }
  func.func @transform_0(%arg0: i32, %arg1: i32) -> (i32, i32) {
    %c1_i32 = arith.constant 1 : i32
    %0 = arith.muli %arg0, %c1_i32 : i32
    %1 = arith.addi %0, %arg1 : i32
    %c0_i32 = arith.constant 0 : i32
    %c0_i32_0 = arith.constant 0 : i32
    return %1, %c0_i32 : i32, i32
  }
  func.func @transform_1(%arg0: i32, %arg1: i32) -> (i32, i32) {
    %c1_i32 = arith.constant 1 : i32
    %0 = arith.muli %arg0, %c1_i32 : i32
    %1 = arith.addi %0, %arg1 : i32
    %c0_i32 = arith.constant 0 : i32
    %c0_i32_0 = arith.constant 0 : i32
    return %1, %c0_i32 : i32, i32
  }
  func.func @transform_2(%arg0: i32, %arg1: i32) -> (i32, i32, i32) {
    %c0_i32 = arith.constant 0 : i32
    %c0_i32_0 = arith.constant 0 : i32
    %c0_i32_1 = arith.constant 0 : i32
    return %arg0, %c0_i32, %c0_i32_0 : i32, i32, i32
  }
}

</mosaic_0001>

<llo_original>
// kernel: quantization_loss.1
$region0: #{quantization_loss.1}
  #allocation0 [shape = 'u32[]', space=smem, size = 0x4, offset = 0x4, fixed_abs, tag = 'smem constant byte address 0x4 - core index']
  #allocation1 [shape = 'u32[144,128]{1,0:T(1,128)}', space=vmem, size = 0x12000, scoped, tag = 'internal scratch']
  #allocation2 [shape = 'f32[8,128]{1,0:T(8,128)}', space=vmem, size = 0x1000, scoped, tag = 'scratch operand']
  %s0 = inlined_call_operand.vmem [shape: f32[16,128], index: 0, kind: input, shape index: {}]
  %s1 = inlined_call_operand.vmem [shape: f32[16,128], index: 1, kind: input, shape index: {}]
  %s2 = inlined_call_operand.vmem [shape: f32[1,8,128], index: 2, kind: output, shape index: {}]
  %s3 = sld [smem:[#allocation0]]
  $region26: #{quantization_loss.1} parent=0
    _
  %s5 = ssub.s32 1, %s3
  %s6 = scalar_select 0, %s5, %s3
  // Predicated region
  $region2: #{quantization_loss.1} parent=0 // pred_check
    _
  $region3: #{quantization_loss.1} parent=0 // pred_check_branch
    %8 = sbr.rel (0) target = $region5
  $region4: #{quantization_loss.1} parent=0 // pred_region
    %s9 = sadd.s32 0, 0
    %s10 = smul.u32 2, %s9
    %p11 = scmp.lt.s32.totalorder %s10, 1
    %s12 = scalar_select %p11, %s10, 1
    %s13 = smul.addr %s12, 8
    %s14 = scalar_lea.vmem %s0, %s13
    %s15 = sadd.s32 0, 0
    %s16 = smul.u32 2, %s15
  $region5: #{quantization_loss.1} parent=0 // pred_fallthru
    _
  // Predicated region
  $region6: #{quantization_loss.1} parent=0 // pred_check
    _
  $region7: #{quantization_loss.1} parent=0 // pred_check_branch
    %18 = sbr.rel (0) target = $region9
  $region8: #{quantization_loss.1} parent=0 // pred_region
    %s19 = sadd.s32 0, 0
    %s20 = smul.u32 2, %s19
    %p21 = scmp.lt.s32.totalorder %s20, 1
    %s22 = scalar_select %p21, %s20, 1
    %s23 = smul.addr %s22, 8
    %s24 = scalar_lea.vmem %s1, %s23
    %s25 = sadd.s32 0, 0
    %s26 = smul.u32 2, %s25
  $region9: #{quantization_loss.1} parent=0 // pred_fallthru
    _
  %s27 = sadd.s32 0, 0
  %s28 = smul.u32 2, %s27
  %p29 = scmp.lt.s32.totalorder %s28, 1
  %s30 = scalar_select %p29, %s28, 1
  %s31 = smul.addr %s30, 8
  %s32 = scalar_lea.vmem %s0, %s31
  %s33 = sadd.s32 0, 0
  %s34 = smul.u32 2, %s33
  %p35 = scmp.lt.s32.totalorder %s34, 1
  %s36 = scalar_select %p35, %s34, 1
  %s37 = smul.addr %s36, 8
  %s38 = scalar_lea.vmem %s1, %s37
  %s39 = sadd.s32 0, 0
  %s40 = smul.u32 2, %s39
  %p41 = scmp.lt.s32.totalorder %s40, 1
  %s42 = scalar_select %p41, %s40, 1
  %s43 = smul.addr %s42, 8
  %s44 = scalar_lea.vmem %s0, %s43
  %s45 = sadd.s32 0, 0
  %s46 = smul.u32 2, %s45
  %s47 = sadd.s32 0, 0
  %s48 = smul.u32 2, %s47
  %p49 = scmp.lt.s32.totalorder %s48, 1
  %s50 = scalar_select %p49, %s48, 1
  %s51 = smul.addr %s50, 8
  %s52 = scalar_lea.vmem %s1, %s51
  %s53 = sadd.s32 0, 0
  %s54 = smul.u32 2, %s53
  %p55 = scmp.eq.s32.totalorder 0, 0
  // Predicated region
  $region10: #{quantization_loss.1} parent=0 // pred_check
    %p56 = pneg %p55
  $region11: #{quantization_loss.1} parent=0 // pred_check_branch
    %58 = sbr.rel (%p56) target = $region13
  $region12: #{quantization_loss.1} parent=0 // pred_region
    %59 = vst [vmem:[#allocation2] sm:$0xff] 0.0
  $region13: #{quantization_loss.1} parent=0 // pred_fallthru
    _
  %v60 = vld [vmem:[%s44] sm:$0xff]
  %v61 = vld [vmem:[%s44 + $0x8] sm:$0xff]
  %v62 = vld [vmem:[%s52] sm:$0xff]
  %v63 = vld [vmem:[%s52 + $0x8] sm:$0xff]
  %v64 = vsub.f32 %v62, %v60
  %v65 = vsub.f32 %v63, %v61
  %v66 = vmul.f32 %v64, %v64
  %v67 = vmul.f32 %v65, %v65
  %v68 = vld [vmem:[#allocation2] sm:$0xff]
  %v69 = vadd.f32 %v66, %v67
  %v70 = vadd.f32 %v68, %v69
  %71 = vst [vmem:[#allocation2] sm:$0xff] %v70
  // Predicated region
  $region14: #{quantization_loss.1} parent=0 // pred_check
    %p72 = pneg %p55
  $region15: #{quantization_loss.1} parent=0 // pred_check_branch
    %74 = sbr.rel (%p72) target = $region17
  $region16: #{quantization_loss.1} parent=0 // pred_region
    %v75 = vld [vmem:[#allocation2] sm:$0xff]
    %76 = vst [vmem:[%s2] sm:$0xff] %v75
  $region17: #{quantization_loss.1} parent=0 // pred_fallthru
    _
  // Predicated region
  $region18: #{quantization_loss.1} parent=0 // pred_check
    _
  $region19: #{quantization_loss.1} parent=0 // pred_check_branch
    %78 = sbr.rel (0) target = $region21
  $region20: #{quantization_loss.1} parent=0 // pred_region
    _
  $region21: #{quantization_loss.1} parent=0 // pred_fallthru
    _
  // Predicated region
  $region22: #{quantization_loss.1} parent=0 // pred_check
    _
  $region23: #{quantization_loss.1} parent=0 // pred_check_branch
    %80 = sbr.rel (0) target = $region25
  $region24: #{quantization_loss.1} parent=0 // pred_region
    _
  $region25: #{quantization_loss.1} parent=0 // pred_fallthru
    _

</llo_original>
